<compile_context>
chip_gen: v7x
topology: tpu7x:2x2x1
jax: 0.10.0
libtpu: 0.0.40
codegen_flags: <defaults>
</compile_context>

<pallas_src>
import functools

import jax
import jax.numpy as jnp
from jax import lax
from jax.experimental import pallas as pl
from jax.experimental.pallas import tpu as pltpu

EPS = 1e-5

_VMEM = pl.BlockSpec(memory_space=pltpu.MemorySpace.VMEM)


# --------------------------------------------------------------------------- #
# pltpu.roll direction probe (out[i] = in[i - shift]  vs  out[i] = in[i + shift])
# --------------------------------------------------------------------------- #
def _roll_probe_kernel(x_ref, o_ref):
    o_ref[...] = pltpu.roll(x_ref[...], 1, 1)


@functools.lru_cache(maxsize=1)
def detect_roll_convention():
    """True iff pltpu.roll matches np.roll (out[i] = in[i - shift]). Cached."""
    x = jnp.arange(8 * 256, dtype=jnp.float32).reshape(8, 256)
    y = pl.pallas_call(
        _roll_probe_kernel,
        out_shape=jax.ShapeDtypeStruct((8, 256), jnp.float32),
        in_specs=[_VMEM],
        out_specs=_VMEM,
    )(x)
    y = jax.device_get(jax.block_until_ready(y))
    if float(y[0, 1]) == 0.0:      # np.roll convention
        return True
    if float(y[0, 0]) == 1.0:      # opposite convention
        return False
    raise RuntimeError("unexpected pltpu.roll semantics")


# --------------------------------------------------------------------------- #
# Main kernel
# --------------------------------------------------------------------------- #
def _outu_kernel(x_ref, w1_ref, w2_ref, g1_ref, b1_ref, g2_ref, b2_ref, o_ref,
                 *, N, C, H, W, roll_forward):
    # x_ref : (N*C, H*W)            f32 VMEM, row = n*C + c, lane = h*W + w
    # w1_ref: (9, N*C, N*C)         f32 VMEM, block-diagonal per-tap weights
    # w2_ref: (9, OUT_ROWS, N*C)    f32 VMEM, block-diag (+ zero-padded rows)
    # g*/b* : (N*C, 1)              f32 VMEM, BN affine params replicated per n
    # o_ref : (OUT_ROWS, H*W)       f32 VMEM, row = n*K + k (padded rows are 0)
    NC, HW = x_ref.shape
    inv_cnt = 1.0 / float(N * H * W)   # BN reduces over (n, h, w) per channel

    # Per-lane spatial coordinates within one image.  W, H are powers of two
    # here, so the div/mod lower to shifts/ands.
    p = lax.broadcasted_iota(jnp.int32, (1, HW), 1)
    h_idx = p // W
    w_idx = p % W

    def tap_mask(dh, dw):
        # Validity of the shifted read (zero-padding halo of the SAME conv).
        conds = []
        if dh == -1:
            conds.append(h_idx >= 1)
        elif dh == 1:
            conds.append(h_idx <= H - 2)
        if dw == -1:
            conds.append(w_idx >= 1)
        elif dw == 1:
            conds.append(w_idx <= W - 2)
        if not conds:
            return None                     # centre tap: always valid
        m = conds[0]
        for c in conds[1:]:
            m = jnp.logical_and(m, c)
        return m

    def channel_total(s):
        # s: (N*C, 1) per-row sums -> per-channel totals replicated to every
        # row of that channel.  Summing all N rotations by multiples of C is
        # independent of pltpu.roll's direction convention.
        tot = s
        for j in range(1, N):
            tot = tot + pltpu.roll(s, j * C, 0)
        return tot

    def batch_norm(x, g_ref, b_ref):
        # Training-mode batch stats, centered two-pass (biased) variance.
        s1 = channel_total(jnp.sum(x, axis=1, keepdims=True))      # (NC, 1)
        mean = s1 * inv_cnt
        d = x - mean
        s2 = channel_total(jnp.sum(d * d, axis=1, keepdims=True))  # (NC, 1)
        var = s2 * inv_cnt
        scale = g_ref[...] * lax.rsqrt(var + EPS)
        return d * scale + b_ref[...]

    def conv3x3(x, w_ref):
        # 3x3 SAME conv: 9 lane-rolls (XLU) + border masks, channel mix as a
        # small block-diagonal MXU dot per tap, chained into one f32 acc.
        rows_out = w_ref.shape[1]
        acc = jnp.zeros((rows_out, HW), jnp.float32)
        for t in range(9):
            dh, dw = t // 3 - 1, t % 3 - 1
            off = dh * W + dw                      # shifted read: x[p + off]
            shift = ((-off) if roll_forward else off) % HW
            s = pltpu.roll(x, shift, 1) if shift else x
            m = tap_mask(dh, dw)
            if m is not None:
                s = jnp.where(m, s, 0.0)
            acc = acc + jnp.dot(w_ref[t], s, preferred_element_type=jnp.float32)
        return acc

    x = x_ref[...]
    y = batch_norm(x, g1_ref, b1_ref)
    y = conv3x3(y, w1_ref)
    y = jnp.maximum(batch_norm(y, g2_ref, b2_ref), 0.0)
    y = conv3x3(y, w2_ref)
    o_ref[...] = jnp.maximum(y, 0.0)


# --------------------------------------------------------------------------- #
# Wrapper (NCHW in / NCHW out)
# --------------------------------------------------------------------------- #
@functools.partial(jax.jit, static_argnames=("roll_forward",))
def outu_forward(x_nchw, w1_hwio, w2_hwio, g1, b1, g2, b2, roll_forward=True):
    """x_nchw: (N, C, H, W) f32. Returns (N, K, H, W) f32 (PyTorch NCHW)."""
    N, C, H, W = x_nchw.shape
    K = w2_hwio.shape[-1]
    HW = H * W
    NC = N * C
    out_rows = -(-(N * K) // 8) * 8          # pad output rows to a sublane tile

    # Sublane-packed layout: row = n*C + c, lane = h*W + w.
    x_pk = x_nchw.astype(jnp.float32).reshape(NC, HW)

    # Conv weights: (kh, kw, ci, co) -> (tap, co, ci) -> block-diag kron(I_N, W_tap).
    w1_t = jnp.transpose(w1_hwio.astype(jnp.float32), (0, 1, 3, 2)).reshape(9, C, C)
    w2_t = jnp.transpose(w2_hwio.astype(jnp.float32), (0, 1, 3, 2)).reshape(9, K, C)
    eye_n = jnp.eye(N, dtype=jnp.float32)
    w1_blk = jnp.einsum("nm,tij->tnimj", eye_n, w1_t).reshape(9, NC, NC)
    w2_blk = jnp.einsum("nm,tij->tnimj", eye_n, w2_t).reshape(9, N * K, NC)
    w2_blk = jnp.pad(w2_blk, ((0, 0), (0, out_rows - N * K), (0, 0)))

    def bn_rows(v):
        # (C,) -> (N*C, 1), row n*C + c holds v[c].
        return jnp.tile(v.astype(jnp.float32).reshape(1, C), (N, 1)).reshape(NC, 1)

    out_pk = pl.pallas_call(
        functools.partial(_outu_kernel, N=N, C=C, H=H, W=W,
                          roll_forward=roll_forward),
        out_shape=jax.ShapeDtypeStruct((out_rows, HW), jnp.float32),
        in_specs=[_VMEM] * 7,
        out_specs=_VMEM,
    )(x_pk, w1_blk, w2_blk, bn_rows(g1), bn_rows(b1), bn_rows(g2), bn_rows(b2))

    # (N*K, H*W) rows (n*K + k) -> (N, K, H, W); drop the zero-padded rows.
    return out_pk[:N * K].reshape(N, K, H, W)


# --------------------------------------------------------------------------- #
# Pure-JAX reference (training-mode BN, same as the PyTorch module)
# --------------------------------------------------------------------------- #
def outu_reference(x_nchw, w1_hwio, w2_hwio, g1, b1, g2, b2):
    def bn(x, g, b):
        mean = jnp.mean(x, axis=(0, 2, 3), keepdims=True)
        var = jnp.mean((x - mean) ** 2, axis=(0, 2, 3), keepdims=True)
        xh = (x - mean) * lax.rsqrt(var + EPS)
        return xh * g.reshape(1, -1, 1, 1) + b.reshape(1, -1, 1, 1)

    dn = ('NCHW', 'HWIO', 'NCHW')
    y = bn(x_nchw, g1, b1)
    y = lax.conv_general_dilated(y, w1_hwio, (1, 1), 'SAME',
                                 dimension_numbers=dn,
                                 precision=lax.Precision.HIGHEST)
    y = jnp.maximum(bn(y, g2, b2), 0.0)
    y = lax.conv_general_dilated(y, w2_hwio, (1, 1), 'SAME',
                                 dimension_numbers=dn,
                                 precision=lax.Precision.HIGHEST)
    return jnp.maximum(y, 0.0)


if __name__ == "__main__":
    # Shapes consistent with OutU(channel=4, num_class=3) on a 16x16 map.
    N, C, H, W, K = 2, 4, 16, 16, 3

    key = jax.random.PRNGKey(0)
    kx, kw1, kw2, kg1, kb1, kg2, kb2 = jax.random.split(key, 7)

    x = jax.random.normal(kx, (N, C, H, W), jnp.float32)
    # Conv weights in HWIO (kh, kw, Cin, Cout).
    w1 = jax.random.normal(kw1, (3, 3, C, C), jnp.float32) * (1.0 / (3.0 * C ** 0.5))
    w2 = jax.random.normal(kw2, (3, 3, C, K), jnp.float32) * (1.0 / (3.0 * C ** 0.5))
    # BN affine params (PyTorch init is ones/zeros; perturbed to be nontrivial).
    g1 = 1.0 + 0.1 * jax.random.normal(kg1, (C,), jnp.float32)
    b1 = 0.1 * jax.random.normal(kb1, (C,), jnp.float32)
    g2 = 1.0 + 0.1 * jax.random.normal(kg2, (C,), jnp.float32)
    b2 = 0.1 * jax.random.normal(kb2, (C,), jnp.float32)

    roll_fwd = detect_roll_convention()

    out = jax.block_until_ready(
        outu_forward(x, w1, w2, g1, b1, g2, b2, roll_forward=roll_fwd))
    ref = jax.block_until_ready(outu_reference(x, w1, w2, g1, b1, g2, b2))

    assert out.shape == (N, K, H, W), out.shape
    # The in-kernel channel mix uses the MXU at default contraction precision,
    # which may round f32 operands to bf16; the tolerance is sized for that
    # (an exact-f32 contraction gives ~1e-6 diffs against the HIGHEST-precision
    # reference).
    if not bool(jnp.allclose(out, ref, rtol=2e-2, atol=2e-2)):
        raise RuntimeError(
            f"mismatch vs reference, max abs diff = "
            f"{float(jnp.max(jnp.abs(out - ref)))}")

    print("KERNEL_OK")
</pallas_src>

<mosaic_0001>
module attributes {stable_mosaic.version = 11 : i64} {
  func.func @_roll_probe_kernel(%arg0: memref<8x256xf32, #tpu.memory_space<vmem>>, %arg1: memref<8x256xf32, #tpu.memory_space<vmem>>) attributes {dimension_semantics = [], scalar_prefetch = 0 : i64, scratch_operands = 0 : i64, tpu.core_type = #tpu.core_type<tc>} {
    %c0 = arith.constant 0 : index
    %c0_0 = arith.constant 0 : index
    %0 = vector.load %arg0[%c0, %c0_0] : memref<8x256xf32, #tpu.memory_space<vmem>>, vector<8x256xf32>
    %c1_i32 = arith.constant 1 : i32
    %1 = tpu.dynamic_rotate %0 by %c1_i32 dim 1 : vector<8x256xf32>, i32 -> vector<8x256xf32>
    %c0_1 = arith.constant 0 : index
    %c0_2 = arith.constant 0 : index
    %2 = vector.load %arg1[%c0_1, %c0_2] : memref<8x256xf32, #tpu.memory_space<vmem>>, vector<8x256xf32>
    tpu.vector_store %arg1[%c0_1, %c0_2], %1 {strides = array<i32>} : memref<8x256xf32, #tpu.memory_space<vmem>>, vector<8x256xf32>,
    return
  }
}

</mosaic_0001>

<llo_original>
// kernel: tpu_custom_call.1
$region0: #{tpu_custom_call.1}
  #allocation0 [shape = 'u32[]', space=smem, size = 0x4, offset = 0x4, fixed_abs, tag = 'smem constant byte address 0x4 - core index']
  #allocation1 [shape = 'u32[144,128]{1,0:T(1,128)}', space=vmem, size = 0x12000, scoped, tag = 'internal scratch']
  %s0 = inlined_call_operand.hbm [shape: f32[8,256], index: 0, kind: input, shape index: {}]
  %s1 = inlined_call_operand.hbm [shape: f32[8,256], index: 1, kind: output, shape index: {}]
  %s2 = sld [smem:[#allocation0]]
  $region18: #{tpu_custom_call.1} parent=0
    _
  %s4 = ssub.s32 1, %s2
  %s5 = scalar_select 0, %s4, %s2
  $region1: #{tpu_custom_call.1} parent=0
    #allocation2 [shape = 'u8[8192]{0}', space=vmem, size = 0x2000, scoped, tag = 'input window, operand 0, single buffered']
    #allocation3 [shape = 's32[1]{0}', space=sflag, size = 0x4, scoped, tag = 'scoped memory for tpu_custom_call.1']
    #allocation4 [shape = 's32[1]{0}', space=sflag, size = 0x4, scoped, tag = 'scoped memory for tpu_custom_call.1']
    #allocation5 [shape = 'u8[8192]{0}', space=vmem, size = 0x2000, scoped, tag = 'output window, operand 0, single buffered']
    %6 = vsyncpa [#allocation3], 0
    %7 = vsyncpa [#allocation4], 0
    // Predicated region
    $region2: #{tpu_custom_call.1} parent=1 // pred_check
      _
    $region3: #{tpu_custom_call.1} parent=1 // pred_check_branch
      %9 = sbr.rel (0) target = $region5
    $region4: #{tpu_custom_call.1} parent=1 // pred_region
      %s11 = ssub.s32 256, 256
      %12 = vsyncadd [#allocation3], %s11
      %s14 = sshll.u32 [#allocation2], 4
      %s15 = int_to_ptr.vmem [resolvable:$true] %s14
      %17 = dma.hbm_to_vmem [thread:$0]  %s0, 256, %s15, [#allocation3]
    $region5: #{tpu_custom_call.1} parent=1 // pred_fallthru
      _
    // Predicated region
    $region6: #{tpu_custom_call.1} parent=1 // pred_check
      _
    $region7: #{tpu_custom_call.1} parent=1 // pred_check_branch
      %19 = sbr.rel (0) target = $region9
    $region8: #{tpu_custom_call.1} parent=1 // pred_region
      %20 = dma.done [#allocation3], 256
    $region9: #{tpu_custom_call.1} parent=1 // pred_fallthru
      _
    %v21 = vld [vmem:[#allocation2] sm:$0xff]
    %v22 = vld [vmem:[#allocation2 + $0x8] sm:$0xff]
    %23 = vrot.lane.b32.xlu0 %v21, 1
    %v24 = vpop.permute.xlu0 %23
    %25 = vrot.lane.b32.xlu0 %v22, 1
    %v26 = vpop.permute.xlu0 %25
    %v27 = vlaneseq
    %v28 = vand.u32 %v27, 127
    %vm29 = vcmp.lt.s32.totalorder %v28, 1
    %v30 = vsel %vm29, %v24, %v26
    %v31 = vsel %vm29, %v26, %v24
    %32 = vst [vmem:[#allocation5] sm:$0xff] %v31
    %33 = vst [vmem:[#allocation5 + $0x8] sm:$0xff] %v30
    // Predicated region
    $region10: #{tpu_custom_call.1} parent=1 // pred_check
      _
    $region11: #{tpu_custom_call.1} parent=1 // pred_check_branch
      %35 = sbr.rel (0) target = $region13
    $region12: #{tpu_custom_call.1} parent=1 // pred_region
      %s37 = ssub.s32 256, 256
      %38 = vsyncadd [#allocation4], %s37
      %s40 = sshll.u32 [#allocation5], 4
      %s41 = int_to_ptr.vmem [resolvable:$true] %s40
      %43 = dma.vmem_to_hbm [thread:$0]  %s41, 256, %s1, [#allocation4]
    $region13: #{tpu_custom_call.1} parent=1 // pred_fallthru
      _
    // Predicated region
    $region14: #{tpu_custom_call.1} parent=1 // pred_check
      _
    $region15: #{tpu_custom_call.1} parent=1 // pred_check_branch
      %45 = sbr.rel (0) target = $region17
    $region16: #{tpu_custom_call.1} parent=1 // pred_region
      %46 = dma.done [#allocation4], 256
    $region17: #{tpu_custom_call.1} parent=1 // pred_fallthru
      _
    %47 = vsyncpa [#allocation3], 1
    %48 = vsyncpa [#allocation4], 1

</llo_original>
